<compile_context>
chip_gen: v5e
topology: v5e:2x2
jax: 0.10.0
libtpu: 0.0.40
codegen_flags: <defaults>
</compile_context>

<pallas_src>
import functools

import jax
import jax.numpy as jnp
from jax.experimental import pallas as pl
from jax.experimental.pallas import tpu as pltpu

_TILE_VMEM_BUDGET = 32 * 1024 * 1024  # bytes allowed for the pipelined blocks


def _cdiv(a: int, b: int) -> int:
    return -(-a // b)


def _sublane_pack(itemsize: int) -> int:
    # packed-sublane multiple per element size: f32 -> 8, bf16/f16 -> 16, 1B -> 32
    return {4: 8, 2: 16, 1: 32}.get(itemsize, 8)


def _device_supports_half_valu() -> bool:
    """True on chips with bf16-native VALUs (v6e / v7x); False otherwise."""
    try:
        kind = jax.devices()[0].device_kind.lower()
    except Exception:
        return False
    return any(tok in kind for tok in ("v6", "v7", "tpu7"))


def _rmsnorm_kernel(x_ref, w_ref, o_ref, *, eps: float, inv_hidden: float,
                    half_math: bool):
    # x_ref: (TM, H) tile of hidden_states; w_ref: (1, H) weight row.
    x = x_ref[...]

    # Pass 1: variance in float32 (matches torch).  Only the (TM, 1) result
    # needs to survive this pass; mean(x^2) = sum(x^2) * (1/H), 1/H static.
    x32 = x.astype(jnp.float32)
    variance = jnp.sum(x32 * x32, axis=-1, keepdims=True) * inv_hidden
    inv_rms = jax.lax.rsqrt(variance + eps)            # (TM, 1) f32, EUP

    # Pass 2: normalize + scale, reading the original-dtype tile again.
    w = w_ref[...]
    if half_math:
        # v6e/v7x, bf16 in / bf16 weight: bf16-native VALU path.  inv_rms is
        # cast once per row; one extra bf16 rounding vs. torch's f32-then-cast
        # order (well within bf16 tolerance).
        y = x * inv_rms.astype(x.dtype)
        o_ref[...] = (w * y).astype(o_ref.dtype)
    else:
        # f32 path (v5e has no bf16 VALU; also the default/mixed-dtype path):
        # all elementwise math in f32, a single downcast at the store.
        y = x.astype(jnp.float32) * inv_rms
        o_ref[...] = (w.astype(jnp.float32) * y).astype(o_ref.dtype)


def _pick_row_tile(rows: int, hidden: int, in_bytes: int, out_bytes: int,
                   pack: int) -> int:
    """Row tile: VMEM-budgeted, pack-aligned, >= ~8 grid steps, divisor-preferring."""
    # VMEM per row: double-buffered input + output blocks plus roughly one
    # f32 pass of intermediates inside the kernel.
    per_row = hidden * (2 * in_bytes + 2 * out_bytes + 4)
    tm = _TILE_VMEM_BUDGET // max(per_row, 1)
    tm = min(tm, 512)                       # >512 rows is within ~1% of peak
    # Aim for >= 8 grid steps (>= 4 per v7x TensorCore) so the BlockSpec
    # pipeline has something to double-buffer, but keep tiles >= 128 rows.
    tm = min(tm, max(128, _cdiv(rows, 8)))
    tm = max(pack, (tm // pack) * pack)     # packed-sublane multiple
    if tm >= rows:
        return rows                         # single block; block == full dim is legal

    # Prefer the largest divisor of rows (multiple of the pack, not smaller
    # than tm/2): dense blocks everywhere, no masked ragged tail.
    cand = tm
    floor = max(pack, tm // 2)
    while cand >= floor:
        if rows % cand == 0:
            return cand
        cand -= pack
    return tm   # ragged tail: Pallas masks the partial last block


def llama_rmsnorm(hidden_states: jax.Array, weight: jax.Array, eps: float = 1e-6,
                  row_tile: int | None = None) -> jax.Array:
    """RMSNorm over the last axis of `hidden_states`, scaled by `weight`."""
    orig_shape = hidden_states.shape
    hidden = orig_shape[-1]
    assert weight.shape == (hidden,)

    x2d = hidden_states.reshape(-1, hidden)
    rows = x2d.shape[0]

    # Output dtype follows the module's semantics: half-precision weight ->
    # hidden_states cast to the weight dtype before the scale; otherwise the
    # x * rsqrt promotion leaves everything in float32.
    weight_is_half = weight.dtype in (jnp.float16, jnp.bfloat16)
    out_dtype = weight.dtype if weight_is_half else jnp.float32

    in_bytes = jnp.dtype(x2d.dtype).itemsize
    out_bytes = jnp.dtype(out_dtype).itemsize
    w_bytes = jnp.dtype(weight.dtype).itemsize
    pack = max(_sublane_pack(in_bytes), _sublane_pack(out_bytes))

    # bf16 normalize+scale only where the VALU is bf16-native and both
    # operands are bf16; everything else takes the f32 path.
    half_math = (jnp.dtype(x2d.dtype) == jnp.dtype(jnp.bfloat16)
                 and jnp.dtype(weight.dtype) == jnp.dtype(jnp.bfloat16)
                 and _device_supports_half_valu())

    if row_tile is None:
        tm = _pick_row_tile(rows, hidden, in_bytes, out_bytes, pack)
    else:
        tm = max(1, min(row_tile, rows))
    num_blocks = _cdiv(rows, tm)

    w2d = weight.reshape(1, hidden)

    # Scoped-VMEM limit from the actual tile footprint (+25% and a few MiB of
    # headroom), clamped so it is safe on every generation (v7x: 64 MiB).
    footprint = tm * hidden * (2 * in_bytes + 2 * out_bytes + 4) + 2 * hidden * w_bytes
    vmem_limit = int(min(64 * 1024 * 1024,
                         max(32 * 1024 * 1024,
                             footprint + footprint // 4 + 4 * 1024 * 1024)))

    cost = pl.CostEstimate(
        flops=3 * rows * hidden,
        transcendentals=rows,
        bytes_accessed=rows * hidden * (in_bytes + out_bytes) + hidden * w_bytes,
    )

    out = pl.pallas_call(
        functools.partial(_rmsnorm_kernel, eps=float(eps),
                          inv_hidden=1.0 / hidden, half_math=half_math),
        out_shape=jax.ShapeDtypeStruct((rows, hidden), out_dtype),
        grid_spec=pltpu.PrefetchScalarGridSpec(
            num_scalar_prefetch=0,
            grid=(num_blocks,),
            in_specs=[
                pl.BlockSpec((tm, hidden), lambda i: (i, 0)),
                pl.BlockSpec((1, hidden), lambda i: (0, 0)),  # resident weight row
            ],
            out_specs=pl.BlockSpec((tm, hidden), lambda i: (i, 0)),
        ),
        compiler_params=pltpu.CompilerParams(
            dimension_semantics=("parallel",),
            vmem_limit_bytes=vmem_limit,
        ),
        cost_estimate=cost,
    )(x2d, w2d)

    return out.reshape(*orig_shape[:-1], hidden)


def _reference(x, weight, eps):
    # Pure-JAX reference mirroring the torch module:
    #   variance in f32; x * rsqrt promotes to f32; cast to weight dtype only
    #   if the weight is half precision; then weight * hidden_states.
    var = jnp.mean(x.astype(jnp.float32) ** 2, axis=-1, keepdims=True)
    y = x.astype(jnp.float32) * jax.lax.rsqrt(var + eps)
    if weight.dtype in (jnp.float16, jnp.bfloat16):
        y = y.astype(weight.dtype)
    return weight * y


if __name__ == "__main__":
    key = jax.random.PRNGKey(0)
    eps = 1e-6

    # primary check: f32 input, f32 weight
    batch, seq, hidden = 2, 8, 32
    x = jax.random.normal(key, (batch, seq, hidden), dtype=jnp.float32)
    weight = jnp.ones((hidden,), dtype=jnp.float32)  # nn.Parameter(torch.ones(hidden))
    out = jax.block_until_ready(llama_rmsnorm(x, weight, eps))
    ref = _reference(x, weight, eps)
    assert out.shape == ref.shape and out.dtype == ref.dtype
    assert jnp.allclose(out, ref, atol=1e-5, rtol=1e-5)

    # half-precision branch check (bf16 input + bf16 weight)
    xb = x.astype(jnp.bfloat16)
    wb = weight.astype(jnp.bfloat16)
    outb = jax.block_until_ready(llama_rmsnorm(xb, wb, eps))
    refb = _reference(xb, wb, eps)
    assert outb.dtype == jnp.bfloat16
    assert jnp.allclose(outb.astype(jnp.float32), refb.astype(jnp.float32),
                        atol=2e-2, rtol=2e-2)

    # ragged row count check (rows = 2*7 = 14, single full block, no padding)
    key2 = jax.random.PRNGKey(1)
    x_odd = jax.random.normal(key2, (2, 7, hidden), dtype=jnp.float32)
    out_odd = jax.block_until_ready(llama_rmsnorm(x_odd, weight, eps))
    ref_odd = _reference(x_odd, weight, eps)
    assert jnp.allclose(out_odd, ref_odd, atol=1e-5, rtol=1e-5)

    # ragged-tail / multi-block check (rows = 24 with a forced tile of 16)
    x_multi = jax.random.normal(jax.random.PRNGKey(2), (3, 8, hidden), dtype=jnp.float32)
    out_multi = jax.block_until_ready(llama_rmsnorm(x_multi, weight, eps, row_tile=16))
    ref_multi = _reference(x_multi, weight, eps)
    assert jnp.allclose(out_multi, ref_multi, atol=1e-5, rtol=1e-5)

    print("KERNEL_OK")
</pallas_src>

<mosaic_0001>
module attributes {stable_mosaic.version = 11 : i64} {
  func.func @_rmsnorm_kernel(%arg0: i32, %arg1: memref<16x32xf32, #tpu.memory_space<vmem>>, %arg2: memref<1x32xf32, #tpu.memory_space<vmem>>, %arg3: memref<16x32xf32, #tpu.memory_space<vmem>>) attributes {dimension_semantics = [#tpu.dimension_semantics<parallel>], iteration_bounds = array<i64: 1>, scalar_prefetch = 0 : i64, scratch_operands = 0 : i64, tpu.core_type = #tpu.core_type<tc>, window_params = [{transform_indices = @transform_0, window_bounds = array<i64: 16, 32>}, {pipeline_mode = #tpu.pipeline_mode<synchronous>, transform_indices = @transform_1, window_bounds = array<i64: 1, 32>}, {transform_indices = @transform_2, window_bounds = array<i64: 16, 32>}]} {
    %c0 = arith.constant 0 : index
    %c0_0 = arith.constant 0 : index
    %0 = vector.load %arg1[%c0, %c0_0] : memref<16x32xf32, #tpu.memory_space<vmem>>, vector<16x32xf32>
    %1 = arith.mulf %0, %0 : vector<16x32xf32>
    %cst = arith.constant dense<0.000000e+00> : vector<16xf32>
    %2 = vector.multi_reduction <add>, %1, %cst [1] : vector<16x32xf32> to vector<16xf32>
    %3 = vector.shape_cast %2 : vector<16xf32> to vector<16x1xf32>
    %cst_1 = arith.constant 3.125000e-02 : f32
    %4 = vector.broadcast %cst_1 : f32 to vector<16x1xf32>
    %5 = arith.mulf %3, %4 : vector<16x1xf32>
    %cst_2 = arith.constant 9.99999997E-7 : f32
    %6 = vector.broadcast %cst_2 : f32 to vector<16x1xf32>
    %7 = arith.addf %5, %6 : vector<16x1xf32>
    %8 = math.rsqrt %7 : vector<16x1xf32>
    %c0_3 = arith.constant 0 : index
    %c0_4 = arith.constant 0 : index
    %9 = vector.load %arg2[%c0_3, %c0_4] : memref<1x32xf32, #tpu.memory_space<vmem>>, vector<1x32xf32>
    %10 = vector.broadcast %8 : vector<16x1xf32> to vector<16x32xf32>
    %11 = arith.mulf %0, %10 : vector<16x32xf32>
    %12 = vector.broadcast %9 : vector<1x32xf32> to vector<16x32xf32>
    %13 = arith.mulf %12, %11 : vector<16x32xf32>
    %c0_5 = arith.constant 0 : index
    %c0_6 = arith.constant 0 : index
    %14 = vector.load %arg3[%c0_5, %c0_6] : memref<16x32xf32, #tpu.memory_space<vmem>>, vector<16x32xf32>
    tpu.vector_store %arg3[%c0_5, %c0_6], %13 {strides = array<i32>} : memref<16x32xf32, #tpu.memory_space<vmem>>, vector<16x32xf32>,
    return
  }
  func.func @transform_0(%arg0: i32) -> (i32, i32) {
    %c0_i32 = arith.constant 0 : i32
    %c0_i32_0 = arith.constant 0 : i32
    return %arg0, %c0_i32 : i32, i32
  }
  func.func @transform_1(%arg0: i32) -> (i32, i32) {
    %c0_i32 = arith.constant 0 : i32
    %c0_i32_0 = arith.constant 0 : i32
    %c0_i32_1 = arith.constant 0 : i32
    return %c0_i32, %c0_i32_0 : i32, i32
  }
  func.func @transform_2(%arg0: i32) -> (i32, i32) {
    %c0_i32 = arith.constant 0 : i32
    %c0_i32_0 = arith.constant 0 : i32
    return %arg0, %c0_i32 : i32, i32
  }
}

</mosaic_0001>

<llo_original>
// kernel: tpu_custom_call.1
$region0: #{tpu_custom_call.1}
  #allocation0 [shape = 'u32[]', space=smem, size = 0x4, offset = 0x4, fixed_abs, tag = 'smem constant byte address 0x4 - core index']
  #allocation1 [shape = 'u32[72,128]{1,0:T(1,128)}', space=vmem, size = 0x9000, scoped, tag = 'internal scratch']
  %s0 = inlined_call_operand.hbm [shape: f32[16,32], index: 0, kind: input, shape index: {}]
  %s1 = inlined_call_operand.hbm [shape: f32[1,32], index: 1, kind: input, shape index: {}]
  %s2 = inlined_call_operand.hbm [shape: f32[16,32], index: 2, kind: output, shape index: {}]
  %s3 = sld [smem:[#allocation0]]
  $region26: #{tpu_custom_call.1} parent=0
    _
  %s5 = ssub.s32 1, %s3
  %s6 = scalar_select 0, %s5, %s3
  $region1: #{tpu_custom_call.1} parent=0
    #allocation2 [shape = 'u8[8192]{0}', space=vmem, size = 0x2000, scoped, tag = 'input window, operand 0, single buffered']
    #allocation3 [shape = 's32[1]{0}', space=sflag, size = 0x4, scoped, tag = 'scoped memory for tpu_custom_call.1']
    #allocation4 [shape = 's32[1]{0}', space=sflag, size = 0x4, scoped, tag = 'scoped memory for tpu_custom_call.1']
    #allocation5 [shape = 'u8[512]{0}', space=vmem, size = 0x400, scoped, tag = 'input window, operand 1, single buffered']
    #allocation6 [shape = 's32[1]{0}', space=sflag, size = 0x4, scoped, tag = 'scoped memory for tpu_custom_call.1']
    #allocation7 [shape = 'u8[8192]{0}', space=vmem, size = 0x2000, scoped, tag = 'output window, operand 0, single buffered']
    %7 = vsyncpa [#allocation3], 0
    %8 = vsyncpa [#allocation6], 0
    %9 = vsyncpa [#allocation4], 0
    // Predicated region
    $region2: #{tpu_custom_call.1} parent=1 // pred_check
      _
    $region3: #{tpu_custom_call.1} parent=1 // pred_check_branch
      %11 = sbr.rel (0) target = $region5
    $region4: #{tpu_custom_call.1} parent=1 // pred_region
      %13 = vsyncadd [#allocation3], 0
      %s14 = sshll.u32 %s0, 4
      %s15 = int_to_ptr.hbm [resolvable:$true] %s14
      %s16 = sshll.u32 [#allocation2], 4
      %s17 = int_to_ptr.vmem [resolvable:$true] %s16
      %22 = dma.hbm_to_vmem [thread:$0]  %s15, 256, %s17, [#allocation3], 128, 128, 8
    $region5: #{tpu_custom_call.1} parent=1 // pred_fallthru
      _
    // Predicated region
    $region6: #{tpu_custom_call.1} parent=1 // pred_check
      _
    $region7: #{tpu_custom_call.1} parent=1 // pred_check_branch
      %24 = sbr.rel (0) target = $region9
    $region8: #{tpu_custom_call.1} parent=1 // pred_region
      %26 = vsyncadd [#allocation6], 0
      %s28 = sshll.u32 %s1, 4
      %s29 = int_to_ptr.hbm [resolvable:$true] %s28
      %s30 = sshll.u32 [#allocation5], 4
      %s31 = int_to_ptr.vmem [resolvable:$true] %s30
      %33 = dma.hbm_to_vmem [thread:$0]  %s29, 16, %s31, [#allocation6]
    $region9: #{tpu_custom_call.1} parent=1 // pred_fallthru
      _
    // Predicated region
    $region10: #{tpu_custom_call.1} parent=1 // pred_check
      _
    $region11: #{tpu_custom_call.1} parent=1 // pred_check_branch
      %35 = sbr.rel (0) target = $region13
    $region12: #{tpu_custom_call.1} parent=1 // pred_region
      %37 = dma.done [#allocation3], 256
    $region13: #{tpu_custom_call.1} parent=1 // pred_fallthru
      _
    // Predicated region
    $region14: #{tpu_custom_call.1} parent=1 // pred_check
      _
    $region15: #{tpu_custom_call.1} parent=1 // pred_check_branch
      %39 = sbr.rel (0) target = $region17
    $region16: #{tpu_custom_call.1} parent=1 // pred_region
      %41 = dma.done [#allocation6], 16
    $region17: #{tpu_custom_call.1} parent=1 // pred_fallthru
      _
    %v42 = vld [vmem:[#allocation2] sm:$0xff]
    %v43 = vld [vmem:[#allocation2 + $0x8] sm:$0xff]
    %v44 = vmul.f32 %v42, %v42
    %v45 = vmul.f32 %v43, %v43
    %vm46 = vcmask 261120
    %v47 = vsel %vm46, %v44, 0.0
    %48 = vadd.xlane.f32.xlu0 %v47
    %v49 = vpop.xlane.xlu0 %48
    %v50 = vsel %vm46, %v45, 0.0
    %51 = vadd.xlane.f32.xlu0 %v50
    %v52 = vpop.xlane.xlu0 %51
    %v53 = vmul.f32 %v49, 0.03125
    %v54 = vmul.f32 %v52, 0.03125
    %v55 = vadd.f32 %v53, 1e-06
    %v56 = vadd.f32 %v54, 1e-06
    %v57 = vrsqrt.pop %v55
    %v58 = vmul.f32 %v57, %v55
    %v59 = vmul.f32 %v58, %v57
    %v60 = vmul.f32 0.5, %v59
    %v61 = vsub.f32 1.5, %v60
    %v62 = vmul.f32 %v57, %v61
    %vm63 = vweird.f32 %v55
    %vm64 = vweird.f32 %v57
    %vm65 = vmor %vm63, %vm64
    %v66 = vsel %vm65, %v57, %v62
    %v67 = vrsqrt.pop %v56
    %v68 = vmul.f32 %v67, %v56
    %v69 = vmul.f32 %v68, %v67
    %v70 = vmul.f32 0.5, %v69
    %v71 = vsub.f32 1.5, %v70
    %v72 = vmul.f32 %v67, %v71
    %vm73 = vweird.f32 %v56
    %vm74 = vweird.f32 %v67
    %vm75 = vmor %vm73, %vm74
    %v76 = vsel %vm75, %v67, %v72
    %v77 = vld [vmem:[#allocation5] sm:$0x1]
    %v78 = vmul.f32 %v42, %v66
    %v79 = vmul.f32 %v43, %v76
    %v81 = vperm.slane %v77, 0
    %v83 = vmul.f32 %v81, %v78
    %v84 = vmul.f32 %v81, %v79
    %85 = vst.msk [vmem:[#allocation7] sm:$0xff] %vm46, %v83
    %86 = vst.msk [vmem:[#allocation7 + $0x8] sm:$0xff] %vm46, %v84
    // Predicated region
    $region18: #{tpu_custom_call.1} parent=1 // pred_check
      _
    $region19: #{tpu_custom_call.1} parent=1 // pred_check_branch
      %88 = sbr.rel (0) target = $region21
    $region20: #{tpu_custom_call.1} parent=1 // pred_region
      %90 = vsyncadd [#allocation4], 0
      %s91 = sshll.u32 [#allocation7], 4
      %s92 = int_to_ptr.vmem [resolvable:$true] %s91
      %s93 = sshll.u32 %s2, 4
      %s94 = int_to_ptr.hbm [resolvable:$true] %s93
      %99 = dma.vmem_to_hbm [thread:$0]  %s92, 256, %s94, [#allocation4], 128, 128, 8
    $region21: #{tpu_custom_call.1} parent=1 // pred_fallthru
      _
    // Predicated region
    $region22: #{tpu_custom_call.1} parent=1 // pred_check
      _
    $region23: #{tpu_custom_call.1} parent=1 // pred_check_branch
      %101 = sbr.rel (0) target = $region25
    $region24: #{tpu_custom_call.1} parent=1 // pred_region
      %103 = dma.done [#allocation4], 256
    $region25: #{tpu_custom_call.1} parent=1 // pred_fallthru
      _
    %104 = vsyncpa [#allocation3], 1
    %105 = vsyncpa [#allocation6], 1
    %106 = vsyncpa [#allocation4], 1

</llo_original>
